<compile_context>
chip_gen: v5e
topology: v5e:2x2
jax: 0.10.0
libtpu: 0.0.40
codegen_flags: <defaults>
</compile_context>

<pallas_src>
import functools

import jax
import jax.numpy as jnp
from jax.experimental import pallas as pl
from jax.experimental.pallas import tpu as pltpu


def _round_up(n, m):
    return ((n + m - 1) // m) * m


def _memory_kernel(x_ref, w1_ref, w2_ref, h_ref, out_ref, *, apply_tanh):
    # Fused (functional + memory) linear: one MXU pass.
    #   x   = [f_h | m_h | 1 | 0-pad]                 (B_pad, K_pad)
    #   w1  = [[w_fun],[w_mem],[b_fun+b_mem, 1], 0]   (K_pad, M_pad)
    # => h[:, :M] = f_h @ w_fun + m_h @ w_mem + b,  h[:, M] = 1 (bias carrier)
    h = jnp.dot(x_ref[...], w1_ref[...], preferred_element_type=jnp.float32)
    h_ref[...] = h.astype(h_ref.dtype)

    # Output layer with bias folded into row M of w2 (driven by h[:, M] == 1).
    o = jnp.dot(h, w2_ref[...], preferred_element_type=jnp.float32)
    if apply_tanh:
        o = jnp.tanh(o)
    out_ref[...] = o.astype(out_ref.dtype)


def pack_params(params, functional_size, memory_size, output_size):
    """Pack nn.Linear-style params into two lane-dense MXU weight matrices.

    params: w_mem (M,M), b_mem (M,), w_fun (F,M), b_fun (M,), w_out (M,O),
    b_out (O,) -- weights already in (in_features, out_features) layout.
    """
    F, M, O = functional_size, memory_size, output_size
    K_pad = _round_up(F + M + 1, 128)      # [f_h | m_h | 1]
    M_pad = _round_up(M + 1, 128)          # [h | 1]
    O_pad = _round_up(O, 128)

    w1 = jnp.zeros((K_pad, M_pad), jnp.float32)
    w1 = w1.at[:F, :M].set(params["w_fun"])
    w1 = w1.at[F:F + M, :M].set(params["w_mem"])
    w1 = w1.at[F + M, :M].set(params["b_fun"] + params["b_mem"])  # fused bias
    w1 = w1.at[F + M, M].set(1.0)          # constant-1 carrier for output bias

    w2 = jnp.zeros((M_pad, O_pad), jnp.float32)
    w2 = w2.at[:M, :O].set(params["w_out"])
    w2 = w2.at[M, :O].set(params["b_out"])  # folded output bias

    return {"w1": w1, "w2": w2,
            "F": F, "M": M, "O": O,
            "K_pad": K_pad, "M_pad": M_pad, "O_pad": O_pad}


def memory_forward(f_h, m_h, packed, *, apply_tanh=True):
    """Single LMN memory step.  Returns (h (B, M), out (B, O))."""
    B = f_h.shape[0]
    F, M, O = packed["F"], packed["M"], packed["O"]
    K_pad, M_pad, O_pad = packed["K_pad"], packed["M_pad"], packed["O_pad"]
    B_pad = _round_up(max(B, 1), 8)

    # Build the lane-dense fused activation [f_h | m_h | 1 | 0-pad].
    x = jnp.zeros((B_pad, K_pad), jnp.float32)
    x = x.at[:B, :F].set(f_h.astype(jnp.float32))
    x = x.at[:B, F:F + M].set(m_h.astype(jnp.float32))
    x = x.at[:, F + M].set(1.0)

    full = lambda shape: pl.BlockSpec(shape, lambda: (0,) * len(shape))

    flops = 2 * B_pad * K_pad * M_pad + 2 * B_pad * M_pad * O_pad
    transcendentals = B_pad * O_pad if apply_tanh else 0
    bytes_accessed = 4 * (B_pad * K_pad + K_pad * M_pad + M_pad * O_pad
                          + B_pad * M_pad + B_pad * O_pad)

    h_pad, out_pad = pl.pallas_call(
        functools.partial(_memory_kernel, apply_tanh=apply_tanh),
        out_shape=(
            jax.ShapeDtypeStruct((B_pad, M_pad), jnp.float32),
            jax.ShapeDtypeStruct((B_pad, O_pad), jnp.float32),
        ),
        in_specs=[
            full((B_pad, K_pad)),
            full((K_pad, M_pad)),
            full((M_pad, O_pad)),
        ],
        out_specs=(
            full((B_pad, M_pad)),
            full((B_pad, O_pad)),
        ),
        cost_estimate=pl.CostEstimate(
            flops=flops,
            transcendentals=transcendentals,
            bytes_accessed=bytes_accessed,
        ),
        compiler_params=pltpu.CompilerParams(vmem_limit_bytes=32 * 1024 * 1024),
    )(x, packed["w1"], packed["w2"])

    # Slice the padded, lane-dense slabs back to the logical shapes.
    return h_pad[:B, :M], out_pad[:B, :O]


def init_params(key, memory_size, functional_size, output_size):
    """Deterministic init mimicking nn.Linear's uniform(-1/sqrt(fan_in), +1/sqrt(fan_in)).
    Weights stored transposed as (in_features, out_features)."""
    ks = jax.random.split(key, 6)

    def lin(kw, kb, fan_in, fan_out):
        bound = 1.0 / jnp.sqrt(fan_in)
        w = jax.random.uniform(kw, (fan_in, fan_out), jnp.float32, -bound, bound)
        b = jax.random.uniform(kb, (fan_out,), jnp.float32, -bound, bound)
        return w, b

    w_mem, b_mem = lin(ks[0], ks[1], memory_size, memory_size)
    w_fun, b_fun = lin(ks[2], ks[3], functional_size, memory_size)
    w_out, b_out = lin(ks[4], ks[5], memory_size, output_size)
    return {"w_mem": w_mem, "b_mem": b_mem,
            "w_fun": w_fun, "b_fun": b_fun,
            "w_out": w_out, "b_out": b_out}


def reference_forward(f_h, m_h, params, apply_tanh=True):
    m = m_h @ params["w_mem"] + params["b_mem"]
    f = f_h @ params["w_fun"] + params["b_fun"]
    h = m + f
    out = h @ params["w_out"] + params["b_out"]
    if apply_tanh:
        out = jnp.tanh(out)
    return h, out


if __name__ == "__main__":
    batch = 2
    memory_size = 32
    functional_size = 16
    output_size = 8

    key = jax.random.PRNGKey(0)
    k_f, k_m, k_p = jax.random.split(key, 3)

    f_h = jax.random.normal(k_f, (batch, functional_size), jnp.float32)
    m_h = jax.random.normal(k_m, (batch, memory_size), jnp.float32)
    params = init_params(k_p, memory_size, functional_size, output_size)
    packed = pack_params(params, functional_size, memory_size, output_size)

    h, out = memory_forward(f_h, m_h, packed)
    jax.block_until_ready((h, out))

    h_ref, out_ref = reference_forward(f_h, m_h, params)
    assert h.shape == (batch, memory_size)
    assert out.shape == (batch, output_size)
    assert jnp.allclose(h, h_ref, atol=1e-5), "h mismatch"
    assert jnp.allclose(out, out_ref, atol=1e-5), "out mismatch"

    print("KERNEL_OK")
</pallas_src>

<mosaic_0001>
module attributes {stable_mosaic.version = 11 : i64} {
  func.func @_memory_kernel(%arg0: memref<8x128xf32, #tpu.memory_space<vmem>>, %arg1: memref<128x128xf32, #tpu.memory_space<vmem>>, %arg2: memref<128x128xf32, #tpu.memory_space<vmem>>, %arg3: memref<8x128xf32, #tpu.memory_space<vmem>>, %arg4: memref<8x128xf32, #tpu.memory_space<vmem>>) attributes {dimension_semantics = [], scalar_prefetch = 0 : i64, scratch_operands = 0 : i64, tpu.core_type = #tpu.core_type<tc>} {
    %c0 = arith.constant 0 : index
    %c0_0 = arith.constant 0 : index
    %0 = vector.load %arg0[%c0, %c0_0] : memref<8x128xf32, #tpu.memory_space<vmem>>, vector<8x128xf32>
    %c0_1 = arith.constant 0 : index
    %c0_2 = arith.constant 0 : index
    %1 = vector.load %arg1[%c0_1, %c0_2] : memref<128x128xf32, #tpu.memory_space<vmem>>, vector<128x128xf32>
    %cst = arith.constant dense<0.000000e+00> : vector<8x128xf32>
    %2 = tpu.matmul %0, %1, %cst {dimension_numbers = #tpu.dot_dimension_numbers<[1], [0], [0], [1], [0, 0, 1, 1], [], []>} : vector<8x128xf32>, vector<128x128xf32>, vector<8x128xf32> -> vector<8x128xf32>
    %c0_3 = arith.constant 0 : index
    %c0_4 = arith.constant 0 : index
    %3 = vector.load %arg3[%c0_3, %c0_4] : memref<8x128xf32, #tpu.memory_space<vmem>>, vector<8x128xf32>
    tpu.vector_store %arg3[%c0_3, %c0_4], %2 {strides = array<i32>} : memref<8x128xf32, #tpu.memory_space<vmem>>, vector<8x128xf32>,
    %c0_5 = arith.constant 0 : index
    %c0_6 = arith.constant 0 : index
    %4 = vector.load %arg2[%c0_5, %c0_6] : memref<128x128xf32, #tpu.memory_space<vmem>>, vector<128x128xf32>
    %cst_7 = arith.constant dense<0.000000e+00> : vector<8x128xf32>
    %5 = tpu.matmul %2, %4, %cst_7 {dimension_numbers = #tpu.dot_dimension_numbers<[1], [0], [0], [1], [0, 0, 1, 1], [], []>} : vector<8x128xf32>, vector<128x128xf32>, vector<8x128xf32> -> vector<8x128xf32>
    %6 = math.tanh %5 : vector<8x128xf32>
    %c0_8 = arith.constant 0 : index
    %c0_9 = arith.constant 0 : index
    %7 = vector.load %arg4[%c0_8, %c0_9] : memref<8x128xf32, #tpu.memory_space<vmem>>, vector<8x128xf32>
    tpu.vector_store %arg4[%c0_8, %c0_9], %6 {strides = array<i32>} : memref<8x128xf32, #tpu.memory_space<vmem>>, vector<8x128xf32>,
    return
  }
}

</mosaic_0001>

<llo_original>
// kernel: tpu_custom_call.1
$region0: #{tpu_custom_call.1}
  #allocation0 [shape = 'u32[]', space=smem, size = 0x4, offset = 0x4, fixed_abs, tag = 'smem constant byte address 0x4 - core index']
  #allocation1 [shape = 'u32[72,128]{1,0:T(1,128)}', space=vmem, size = 0x9000, scoped, tag = 'internal scratch']
  %s0 = inlined_call_operand.hbm [shape: f32[8,128], index: 0, kind: input, shape index: {}]
  %s1 = inlined_call_operand.hbm [shape: f32[128,128], index: 1, kind: input, shape index: {}]
  %s2 = inlined_call_operand.hbm [shape: f32[128,128], index: 2, kind: input, shape index: {}]
  %s3 = inlined_call_operand.hbm [shape: f32[8,128], index: 3, kind: output, shape index: {0}]
  %s4 = inlined_call_operand.hbm [shape: f32[8,128], index: 4, kind: output, shape index: {1}]
  %5 = xla_tuple %s3, %s4
  %s6 = sld [smem:[#allocation0]]
  $region42: #{tpu_custom_call.1} parent=0
    _
  %s8 = ssub.s32 1, %s6
  %s9 = scalar_select 0, %s8, %s6
  $region1: #{tpu_custom_call.1} parent=0
    #allocation2 [shape = 'u8[4096]{0}', space=vmem, size = 0x1000, scoped, tag = 'input window, operand 0, single buffered']
    #allocation3 [shape = 's32[1]{0}', space=sflag, size = 0x4, scoped, tag = 'scoped memory for tpu_custom_call.1']
    #allocation4 [shape = 's32[1]{0}', space=sflag, size = 0x4, scoped, tag = 'scoped memory for tpu_custom_call.1']
    #allocation5 [shape = 'u8[65536]{0}', space=vmem, size = 0x10000, scoped, tag = 'input window, operand 1, single buffered']
    #allocation6 [shape = 's32[1]{0}', space=sflag, size = 0x4, scoped, tag = 'scoped memory for tpu_custom_call.1']
    #allocation7 [shape = 'u8[65536]{0}', space=vmem, size = 0x10000, scoped, tag = 'input window, operand 2, single buffered']
    #allocation8 [shape = 'u8[4096]{0}', space=vmem, size = 0x1000, scoped, tag = 'output window, operand 0, single buffered']
    #allocation9 [shape = 'u8[4096]{0}', space=vmem, size = 0x1000, scoped, tag = 'output window, operand 1, single buffered']
    #allocation10 [shape = 's32[1]{0}', space=sflag, size = 0x4, scoped, tag = 'scoped memory for tpu_custom_call.1']
    %10 = vsyncpa [#allocation3], 0
    %11 = vsyncpa [#allocation6], 0
    %12 = vsyncpa [#allocation4], 0
    %13 = vsyncpa [#allocation10], 0
    // Predicated region
    $region2: #{tpu_custom_call.1} parent=1 // pred_check
      _
    $region3: #{tpu_custom_call.1} parent=1 // pred_check_branch
      %15 = sbr.rel (0) target = $region5
    $region4: #{tpu_custom_call.1} parent=1 // pred_region
      %17 = vsyncadd [#allocation3], 0
      %s19 = sshll.u32 %s0, 4
      %s20 = int_to_ptr.hbm [resolvable:$true] %s19
      %s21 = sshll.u32 [#allocation2], 4
      %s22 = int_to_ptr.vmem [resolvable:$true] %s21
      %24 = dma.hbm_to_vmem [thread:$0]  %s20, 128, %s22, [#allocation3]
    $region5: #{tpu_custom_call.1} parent=1 // pred_fallthru
      _
    // Predicated region
    $region6: #{tpu_custom_call.1} parent=1 // pred_check
      _
    $region7: #{tpu_custom_call.1} parent=1 // pred_check_branch
      %26 = sbr.rel (0) target = $region9
    $region8: #{tpu_custom_call.1} parent=1 // pred_region
      %28 = vsyncadd [#allocation6], 0
      %s29 = sshll.u32 %s1, 4
      %s30 = int_to_ptr.hbm [resolvable:$true] %s29
      %s31 = sshll.u32 [#allocation5], 4
      %s32 = int_to_ptr.vmem [resolvable:$true] %s31
      %37 = dma.hbm_to_vmem [thread:$0]  %s30, 2048, %s32, [#allocation6], 128, 128, 8
    $region9: #{tpu_custom_call.1} parent=1 // pred_fallthru
      _
    // Predicated region
    $region10: #{tpu_custom_call.1} parent=1 // pred_check
      _
    $region11: #{tpu_custom_call.1} parent=1 // pred_check_branch
      %39 = sbr.rel (0) target = $region13
    $region12: #{tpu_custom_call.1} parent=1 // pred_region
      %41 = vsyncadd [#allocation6], 0
      %s42 = sshll.u32 %s2, 4
      %s43 = int_to_ptr.hbm [resolvable:$true] %s42
      %s44 = sshll.u32 [#allocation7], 4
      %s45 = int_to_ptr.vmem [resolvable:$true] %s44
      %50 = dma.hbm_to_vmem [thread:$0]  %s43, 2048, %s45, [#allocation6], 128, 128, 8
    $region13: #{tpu_custom_call.1} parent=1 // pred_fallthru
      _
    // Predicated region
    $region14: #{tpu_custom_call.1} parent=1 // pred_check
      _
    $region15: #{tpu_custom_call.1} parent=1 // pred_check_branch
      %52 = sbr.rel (0) target = $region17
    $region16: #{tpu_custom_call.1} parent=1 // pred_region
      %54 = dma.done [#allocation3], 128
    $region17: #{tpu_custom_call.1} parent=1 // pred_fallthru
      _
    // Predicated region
    $region18: #{tpu_custom_call.1} parent=1 // pred_check
      _
    $region19: #{tpu_custom_call.1} parent=1 // pred_check_branch
      %56 = sbr.rel (0) target = $region21
    $region20: #{tpu_custom_call.1} parent=1 // pred_region
      %58 = dma.done [#allocation6], 2048
    $region21: #{tpu_custom_call.1} parent=1 // pred_fallthru
      _
    // Predicated region
    $region22: #{tpu_custom_call.1} parent=1 // pred_check
      _
    $region23: #{tpu_custom_call.1} parent=1 // pred_check_branch
      %60 = sbr.rel (0) target = $region25
    $region24: #{tpu_custom_call.1} parent=1 // pred_region
      %62 = dma.done [#allocation6], 2048
    $region25: #{tpu_custom_call.1} parent=1 // pred_fallthru
      _
    %v63 = vld [vmem:[#allocation2] sm:$0xff]
    %v64 = vld [vmem:[#allocation5] sm:$0xff]
    %v65 = vld [vmem:[#allocation5 + $0x8] sm:$0xff]
    %v66 = vld [vmem:[#allocation5 + $0x10] sm:$0xff]
    %v67 = vld [vmem:[#allocation5 + $0x18] sm:$0xff]
    %v68 = vld [vmem:[#allocation5 + $0x20] sm:$0xff]
    %v69 = vld [vmem:[#allocation5 + $0x28] sm:$0xff]
    %v70 = vld [vmem:[#allocation5 + $0x30] sm:$0xff]
    %v71 = vld [vmem:[#allocation5 + $0x38] sm:$0xff]
    %v72 = vld [vmem:[#allocation5 + $0x40] sm:$0xff]
    %v73 = vld [vmem:[#allocation5 + $0x48] sm:$0xff]
    %v74 = vld [vmem:[#allocation5 + $0x50] sm:$0xff]
    %v75 = vld [vmem:[#allocation5 + $0x58] sm:$0xff]
    %v76 = vld [vmem:[#allocation5 + $0x60] sm:$0xff]
    %v77 = vld [vmem:[#allocation5 + $0x68] sm:$0xff]
    %v78 = vld [vmem:[#allocation5 + $0x70] sm:$0xff]
    %v79 = vld [vmem:[#allocation5 + $0x78] sm:$0xff]
    %80 = vmatpush.msra.mxu0 %v79
    %81 = vmatpush.msra.mxu0 %v78
    %82 = vmatpush.msra.mxu0 %v77
    %83 = vmatpush.msra.mxu0 %v76
    %84 = vmatpush.msra.mxu0 %v75
    %85 = vmatpush.msra.mxu0 %v74
    %86 = vmatpush.msra.mxu0 %v73
    %87 = vmatpush.msra.mxu0 %v72
    %88 = vmatpush.msra.mxu0 %v71
    %89 = vmatpush.msra.mxu0 %v70
    %90 = vmatpush.msra.mxu0 %v69
    %91 = vmatpush.msra.mxu0 %v68
    %92 = vmatpush.msra.mxu0 %v67
    %93 = vmatpush.msra.mxu0 %v66
    %94 = vmatpush.msra.mxu0 %v65
    %95 = vmatpush.msra.mxu0 %v64
    %96 = vmatmul.f32.gmra.mxu0 %v63
    %v97 = vpop.f32.mrf.mxu0
    %v98 = vadd.f32 0.0, %v97
    %99 = vdwg.mxu0
    %100 = vst [vmem:[#allocation8] sm:$0xff] %v98
    %v101 = vld [vmem:[#allocation7] sm:$0xff]
    %v102 = vld [vmem:[#allocation7 + $0x8] sm:$0xff]
    %v103 = vld [vmem:[#allocation7 + $0x10] sm:$0xff]
    %v104 = vld [vmem:[#allocation7 + $0x18] sm:$0xff]
    %v105 = vld [vmem:[#allocation7 + $0x20] sm:$0xff]
    %v106 = vld [vmem:[#allocation7 + $0x28] sm:$0xff]
    %v107 = vld [vmem:[#allocation7 + $0x30] sm:$0xff]
    %v108 = vld [vmem:[#allocation7 + $0x38] sm:$0xff]
    %v109 = vld [vmem:[#allocation7 + $0x40] sm:$0xff]
    %v110 = vld [vmem:[#allocation7 + $0x48] sm:$0xff]
    %v111 = vld [vmem:[#allocation7 + $0x50] sm:$0xff]
    %v112 = vld [vmem:[#allocation7 + $0x58] sm:$0xff]
    %v113 = vld [vmem:[#allocation7 + $0x60] sm:$0xff]
    %v114 = vld [vmem:[#allocation7 + $0x68] sm:$0xff]
    %v115 = vld [vmem:[#allocation7 + $0x70] sm:$0xff]
    %v116 = vld [vmem:[#allocation7 + $0x78] sm:$0xff]
    %117 = vmatpush.msra.mxu0 %v116
    %118 = vmatpush.msra.mxu0 %v115
    %119 = vmatpush.msra.mxu0 %v114
    %120 = vmatpush.msra.mxu0 %v113
    %121 = vmatpush.msra.mxu0 %v112
    %122 = vmatpush.msra.mxu0 %v111
    %123 = vmatpush.msra.mxu0 %v110
    %124 = vmatpush.msra.mxu0 %v109
    %125 = vmatpush.msra.mxu0 %v108
    %126 = vmatpush.msra.mxu0 %v107
    %127 = vmatpush.msra.mxu0 %v106
    %128 = vmatpush.msra.mxu0 %v105
    %129 = vmatpush.msra.mxu0 %v104
    %130 = vmatpush.msra.mxu0 %v103
    %131 = vmatpush.msra.mxu0 %v102
    %132 = vmatpush.msra.mxu0 %v101
    %133 = vmatmul.f32.gmra.mxu0 %v98
    %v134 = vpop.f32.mrf.mxu0
    %v135 = vadd.f32 0.0, %v134
    %136 = vdwg.mxu0
    %v137 = vtanh.pop %v135
    %138 = vst [vmem:[#allocation9] sm:$0xff] %v137
    // Predicated region
    $region26: #{tpu_custom_call.1} parent=1 // pred_check
      _
    $region27: #{tpu_custom_call.1} parent=1 // pred_check_branch
      %140 = sbr.rel (0) target = $region29
    $region28: #{tpu_custom_call.1} parent=1 // pred_region
      %142 = vsyncadd [#allocation4], 0
      %s144 = sshll.u32 [#allocation8], 4
      %s145 = int_to_ptr.vmem [resolvable:$true] %s144
      %s146 = sshll.u32 %s3, 4
      %s147 = int_to_ptr.hbm [resolvable:$true] %s146
      %149 = dma.vmem_to_hbm [thread:$0]  %s145, 128, %s147, [#allocation4]
    $region29: #{tpu_custom_call.1} parent=1 // pred_fallthru
      _
    // Predicated region
    $region30: #{tpu_custom_call.1} parent=1 // pred_check
      _
    $region31: #{tpu_custom_call.1} parent=1 // pred_check_branch
      %151 = sbr.rel (0) target = $region33
    $region32: #{tpu_custom_call.1} parent=1 // pred_region
      %153 = vsyncadd [#allocation10], 0
      %s155 = sshll.u32 [#allocation9], 4
      %s156 = int_to_ptr.vmem [resolvable:$true] %s155
      %s157 = sshll.u32 %s4, 4
      %s158 = int_to_ptr.hbm [resolvable:$true] %s157
      %160 = dma.vmem_to_hbm [thread:$0]  %s156, 128, %s158, [#allocation10]
    $region33: #{tpu_custom_call.1} parent=1 // pred_fallthru
      _
    // Predicated region
    $region34: #{tpu_custom_call.1} parent=1 // pred_check
      _
    $region35: #{tpu_custom_call.1} parent=1 // pred_check_branch
      %162 = sbr.rel (0) target = $region37
    $region36: #{tpu_custom_call.1} parent=1 // pred_region
      %164 = dma.done [#allocation4], 128
    $region37: #{tpu_custom_call.1} parent=1 // pred_fallthru
      _
    // Predicated region
    $region38: #{tpu_custom_call.1} parent=1 // pred_check
      _
    $region39: #{tpu_custom_call.1} parent=1 // pred_check_branch
      %166 = sbr.rel (0) target = $region41
    $region40: #{tpu_custom_call.1} parent=1 // pred_region
      %168 = dma.done [#allocation10], 128
    $region41: #{tpu_custom_call.1} parent=1 // pred_fallthru
      _
    %169 = vsyncpa [#allocation3], 1
    %170 = vsyncpa [#allocation6], 1
    %171 = vsyncpa [#allocation4], 1
    %172 = vsyncpa [#allocation10], 1

</llo_original>
